<compile_context>
chip_gen: v5e
topology: v5e:2x2
jax: 0.10.0
libtpu: 0.0.40
codegen_flags: <defaults>
</compile_context>

<pallas_src>
import jax
import jax.numpy as jnp
from jax.experimental import pallas as pl
from jax.experimental.pallas import tpu as pltpu


def _round_up(x, m):
    return ((x + m - 1) // m) * m


# ---------------------------------------------------------------------------
# Kernels
# ---------------------------------------------------------------------------
def _fused_ensemble_kernel(x_ref, w1_ref, b1_ref, w2_ref, b2_ref, o_ref):
    # x_ref:  (B, D)            bf16   shared input
    # w1_ref: (D, EH_pad)       bf16   all members' layer-1 weights, lane-concat
    # b1_ref: (1, EH_pad)       f32
    # w2_ref: (EH_pad, EO_pad)  bf16   block-diagonal layer-2 weights
    # b2_ref: (1, EO_pad)       f32
    # o_ref:  (B, EO_pad)       f32    lane-dense output slab
    h = jnp.dot(x_ref[...], w1_ref[...], preferred_element_type=jnp.float32)
    h = jnp.maximum(h + b1_ref[...], 0.0)
    y = jnp.dot(h.astype(jnp.bfloat16), w2_ref[...],
                preferred_element_type=jnp.float32)
    o_ref[...] = y + b2_ref[...]


def _per_member_kernel(x_ref, w1_ref, b1_ref, w2_ref, b2_ref, o_ref):
    # grid=(E,); one ensemble member per grid step.
    # x_ref:  (B, D)              bf16  (shared, same block every step)
    # w1_ref: (1, D, H_pad)       bf16
    # b1_ref: (1, 1, H_pad)       f32
    # w2_ref: (1, H_pad, O_pad)   bf16
    # b2_ref: (1, 1, O_pad)       f32
    # o_ref:  (1, B, O_pad)       f32
    h = jnp.dot(x_ref[...], w1_ref[0], preferred_element_type=jnp.float32)
    h = jnp.maximum(h + b1_ref[0], 0.0)
    y = jnp.dot(h.astype(jnp.bfloat16), w2_ref[0],
                preferred_element_type=jnp.float32)
    o_ref[0] = y + b2_ref[0]


# ---------------------------------------------------------------------------
# Factory: pack weights ONCE, return a jitted forward(x) -> (E, B, O) array.
# ---------------------------------------------------------------------------
def make_ensemble_forward(w1, b1, w2, b2,
                          block_diag_vmem_limit_bytes=16 * 1024 * 1024):
    """Packs the ensemble weights once and returns forward(x) -> (E, B, O)."""
    E, D, H = w1.shape
    O = w2.shape[-1]
    EH, EO = E * H, E * O
    EH_pad = _round_up(EH, 128)
    EO_pad = _round_up(EO, 128)

    # Block-diagonal W2 slab size (bf16) decides fused vs. per-member path.
    use_fused = 2 * EH_pad * EO_pad <= block_diag_vmem_limit_bytes
    vmem = pl.BlockSpec(memory_space=pltpu.MemorySpace.VMEM)

    if use_fused:
        # ---- one-time packing (NOT in the per-call path) --------------------
        # W1: [E, D, H] -> [D, E*H] (member e occupies lanes e*H:(e+1)*H),
        # zero-padded to a 128-lane multiple.
        w1_flat = jnp.transpose(w1, (1, 0, 2)).reshape(D, EH)
        w1_flat = jnp.pad(w1_flat, ((0, 0), (0, EH_pad - EH))).astype(jnp.bfloat16)
        b1_flat = jnp.pad(b1.reshape(1, EH),
                          ((0, 0), (0, EH_pad - EH))).astype(jnp.float32)
        # Block-diagonal W2 in a single einsum against an ExE identity.
        eye = jnp.eye(E, dtype=w2.dtype)
        w2_bd = jnp.einsum("eho,ef->ehfo", w2, eye).reshape(EH, EO)
        w2_bd = jnp.pad(w2_bd, ((0, EH_pad - EH),
                                (0, EO_pad - EO))).astype(jnp.bfloat16)
        b2_flat = jnp.pad(b2.reshape(1, EO),
                          ((0, 0), (0, EO_pad - EO))).astype(jnp.float32)
        w1_flat, b1_flat, w2_bd, b2_flat = map(
            jax.block_until_ready, (w1_flat, b1_flat, w2_bd, b2_flat))

        @jax.jit
        def forward(x):
            B = x.shape[0]
            flops = 2 * B * D * EH + 2 * B * E * H * O      # useful work only
            bytes_accessed = (B * D * 2 + w1_flat.size * 2 + b1_flat.size * 4
                              + w2_bd.size * 2 + b2_flat.size * 4
                              + B * EO_pad * 4)
            out = pl.pallas_call(
                _fused_ensemble_kernel,
                out_shape=jax.ShapeDtypeStruct((B, EO_pad), jnp.float32),
                in_specs=[vmem, vmem, vmem, vmem, vmem],
                out_specs=vmem,
                cost_estimate=pl.CostEstimate(
                    flops=flops, transcendentals=0,
                    bytes_accessed=bytes_accessed),
            )(x.astype(jnp.bfloat16), w1_flat, b1_flat, w2_bd, b2_flat)
            # Single slice + reshape + moveaxis -> leading-E layout (E, B, O).
            return jnp.moveaxis(out[:, :EO].reshape(B, E, O), 1, 0)

        return forward

    # ---- fallback: grid=(E,) per-member path (avoids O(E^2) zero slab) ------
    H_pad = _round_up(H, 128)
    O_pad = _round_up(O, 128)
    w1_p = jnp.pad(w1, ((0, 0), (0, 0), (0, H_pad - H))).astype(jnp.bfloat16)
    b1_p = jnp.pad(b1, ((0, 0), (0, H_pad - H)))[:, None, :].astype(jnp.float32)
    w2_p = jnp.pad(w2, ((0, 0), (0, H_pad - H),
                        (0, O_pad - O))).astype(jnp.bfloat16)
    b2_p = jnp.pad(b2, ((0, 0), (0, O_pad - O)))[:, None, :].astype(jnp.float32)
    w1_p, b1_p, w2_p, b2_p = map(jax.block_until_ready, (w1_p, b1_p, w2_p, b2_p))

    @jax.jit
    def forward(x):
        B = x.shape[0]
        flops = 2 * B * D * E * H + 2 * B * E * H * O
        bytes_accessed = (B * D * 2 + w1_p.size * 2 + b1_p.size * 4
                          + w2_p.size * 2 + b2_p.size * 4
                          + E * B * O_pad * 4)
        out = pl.pallas_call(
            _per_member_kernel,
            out_shape=jax.ShapeDtypeStruct((E, B, O_pad), jnp.float32),
            grid=(E,),
            in_specs=[
                pl.BlockSpec((B, D), lambda e: (0, 0)),
                pl.BlockSpec((1, D, H_pad), lambda e: (e, 0, 0)),
                pl.BlockSpec((1, 1, H_pad), lambda e: (e, 0, 0)),
                pl.BlockSpec((1, H_pad, O_pad), lambda e: (e, 0, 0)),
                pl.BlockSpec((1, 1, O_pad), lambda e: (e, 0, 0)),
            ],
            out_specs=pl.BlockSpec((1, B, O_pad), lambda e: (e, 0, 0)),
            compiler_params=pltpu.CompilerParams(
                dimension_semantics=("parallel",)),
            cost_estimate=pl.CostEstimate(
                flops=flops, transcendentals=0, bytes_accessed=bytes_accessed),
        )(x.astype(jnp.bfloat16), w1_p, b1_p, w2_p, b2_p)
        return out[:, :, :O]

    return forward


# ---------------------------------------------------------------------------
# References
# ---------------------------------------------------------------------------
def _reference_f32(x, w1, b1, w2, b2):
    h = jnp.maximum(jnp.einsum("bd,edh->ebh", x, w1) + b1[:, None, :], 0.0)
    return jnp.einsum("ebh,eho->ebo", h, w2) + b2[:, None, :]


def _reference_bf16(x, w1, b1, w2, b2):
    # Mirrors the kernel numerics: bf16 operands, f32 accum/bias/ReLU.
    xb = x.astype(jnp.bfloat16)
    w1b = w1.astype(jnp.bfloat16)
    w2b = w2.astype(jnp.bfloat16)
    h = jnp.einsum("bd,edh->ebh", xb, w1b,
                   preferred_element_type=jnp.float32) + b1[:, None, :]
    h = jnp.maximum(h, 0.0)
    y = jnp.einsum("ebh,eho->ebo", h.astype(jnp.bfloat16), w2b,
                   preferred_element_type=jnp.float32)
    return y + b2[:, None, :]


if __name__ == "__main__":
    # Small, deterministic synthetic ensemble of E 2-layer MLP members.
    E, B, D, H, O = 3, 8, 32, 64, 32

    key = jax.random.PRNGKey(0)
    kx, kw1, kb1, kw2, kb2 = jax.random.split(key, 5)
    x = jax.random.normal(kx, (B, D), dtype=jnp.float32)
    w1 = jax.random.normal(kw1, (E, D, H), dtype=jnp.float32) * 0.1
    b1 = jax.random.normal(kb1, (E, H), dtype=jnp.float32) * 0.1
    w2 = jax.random.normal(kw2, (E, H, O), dtype=jnp.float32) * 0.1
    b2 = jax.random.normal(kb2, (E, O), dtype=jnp.float32) * 0.1

    ref_bf16 = _reference_bf16(x, w1, b1, w2, b2)
    ref_f32 = _reference_f32(x, w1, b1, w2, b2)

    # Exercise both paths: the fused block-diagonal kernel (default) and the
    # grid=(E,) per-member fallback (forced by a zero VMEM budget).
    paths = [
        ("fused", make_ensemble_forward(w1, b1, w2, b2)),
        ("per_member", make_ensemble_forward(w1, b1, w2, b2,
                                             block_diag_vmem_limit_bytes=0)),
    ]
    for name, fwd in paths:
        stacked = jax.block_until_ready(fwd(x))          # (E, B, O)
        assert stacked.shape == (E, B, O), (name, stacked.shape)
        outs = [stacked[e] for e in range(E)]            # list, as in PyTorch
        for e in range(E):
            assert outs[e].shape == (B, O), (name, e, outs[e].shape)
            assert jnp.allclose(outs[e], ref_bf16[e], atol=5e-3, rtol=5e-3), (
                f"{name}: mismatch vs bf16 reference at member {e}")
            assert jnp.allclose(outs[e], ref_f32[e], atol=1e-1, rtol=1e-1), (
                f"{name}: mismatch vs f32 reference at member {e}")

    print("KERNEL_OK")
</pallas_src>

<mosaic_0001>
module attributes {stable_mosaic.version = 11 : i64} {
  func.func @_fused_ensemble_kernel(%arg0: memref<8x32xbf16, #tpu.memory_space<vmem>>, %arg1: memref<32x256xbf16, #tpu.memory_space<vmem>>, %arg2: memref<1x256xf32, #tpu.memory_space<vmem>>, %arg3: memref<256x128xbf16, #tpu.memory_space<vmem>>, %arg4: memref<1x128xf32, #tpu.memory_space<vmem>>, %arg5: memref<8x128xf32, #tpu.memory_space<vmem>>) attributes {dimension_semantics = [], scalar_prefetch = 0 : i64, scratch_operands = 0 : i64, tpu.core_type = #tpu.core_type<tc>} {
    %c0 = arith.constant 0 : index
    %c0_0 = arith.constant 0 : index
    %0 = vector.load %arg0[%c0, %c0_0] : memref<8x32xbf16, #tpu.memory_space<vmem>>, vector<8x32xbf16>
    %c0_1 = arith.constant 0 : index
    %c0_2 = arith.constant 0 : index
    %1 = vector.load %arg1[%c0_1, %c0_2] : memref<32x256xbf16, #tpu.memory_space<vmem>>, vector<32x256xbf16>
    %cst = arith.constant dense<0.000000e+00> : vector<8x256xf32>
    %2 = tpu.matmul %0, %1, %cst {dimension_numbers = #tpu.dot_dimension_numbers<[1], [0], [0], [1], [0, 0, 1, 1], [], []>} : vector<8x32xbf16>, vector<32x256xbf16>, vector<8x256xf32> -> vector<8x256xf32>
    %c0_3 = arith.constant 0 : index
    %c0_4 = arith.constant 0 : index
    %3 = vector.load %arg2[%c0_3, %c0_4] : memref<1x256xf32, #tpu.memory_space<vmem>>, vector<1x256xf32>
    %4 = vector.broadcast %3 : vector<1x256xf32> to vector<8x256xf32>
    %5 = arith.addf %2, %4 : vector<8x256xf32>
    %cst_5 = arith.constant 0.000000e+00 : f32
    %6 = vector.broadcast %cst_5 : f32 to vector<8x256xf32>
    %7 = arith.maximumf %5, %6 : vector<8x256xf32>
    %8 = arith.truncf %7 : vector<8x256xf32> to vector<8x256xbf16>
    %c0_6 = arith.constant 0 : index
    %c0_7 = arith.constant 0 : index
    %9 = vector.load %arg3[%c0_6, %c0_7] : memref<256x128xbf16, #tpu.memory_space<vmem>>, vector<256x128xbf16>
    %cst_8 = arith.constant dense<0.000000e+00> : vector<8x128xf32>
    %10 = tpu.matmul %8, %9, %cst_8 {dimension_numbers = #tpu.dot_dimension_numbers<[1], [0], [0], [1], [0, 0, 1, 1], [], []>} : vector<8x256xbf16>, vector<256x128xbf16>, vector<8x128xf32> -> vector<8x128xf32>
    %c0_9 = arith.constant 0 : index
    %c0_10 = arith.constant 0 : index
    %11 = vector.load %arg4[%c0_9, %c0_10] : memref<1x128xf32, #tpu.memory_space<vmem>>, vector<1x128xf32>
    %12 = vector.broadcast %11 : vector<1x128xf32> to vector<8x128xf32>
    %13 = arith.addf %10, %12 : vector<8x128xf32>
    %c0_11 = arith.constant 0 : index
    %c0_12 = arith.constant 0 : index
    %14 = vector.load %arg5[%c0_11, %c0_12] : memref<8x128xf32, #tpu.memory_space<vmem>>, vector<8x128xf32>
    tpu.vector_store %arg5[%c0_11, %c0_12], %13 {strides = array<i32>} : memref<8x128xf32, #tpu.memory_space<vmem>>, vector<8x128xf32>,
    return
  }
}

</mosaic_0001>

<llo_original>
// kernel: forward.1
$region0: #{forward.1}
  #allocation0 [shape = 'u32[]', space=smem, size = 0x4, offset = 0x4, fixed_abs, tag = 'smem constant byte address 0x4 - core index']
  #allocation1 [shape = 'u32[72,128]{1,0:T(1,128)}', space=vmem, size = 0x9000, scoped, tag = 'internal scratch']
  %s0 = inlined_call_operand.vmem [shape: bf16[8,32], index: 0, kind: input, shape index: {}]
  %s1 = inlined_call_operand.hbm [shape: bf16[32,256], index: 1, kind: input, shape index: {}]
  %s2 = inlined_call_operand.vmem [shape: f32[1,256], index: 2, kind: input, shape index: {}]
  %s3 = inlined_call_operand.hbm [shape: bf16[256,128], index: 3, kind: input, shape index: {}]
  %s4 = inlined_call_operand.vmem [shape: f32[1,128], index: 4, kind: input, shape index: {}]
  %s5 = inlined_call_operand.vmem [shape: f32[8,128], index: 5, kind: output, shape index: {}]
  %s6 = sld [smem:[#allocation0]]
  $region38: #{forward.1} parent=0
    _
  %s8 = ssub.s32 1, %s6
  %s9 = scalar_select 0, %s8, %s6
  $region1: #{forward.1} parent=0
    #allocation2 [shape = 'u8[16384]{0}', space=vmem, size = 0x4000, scoped, tag = 'input window, operand 1, single buffered']
    #allocation3 [shape = 's32[1]{0}', space=sflag, size = 0x4, scoped, tag = 'scoped memory for forward.1']
    #allocation4 [shape = 'u8[65536]{0}', space=vmem, size = 0x10000, scoped, tag = 'input window, operand 3, single buffered']
    #allocation5 [shape = 's32[1]{0}', space=sflag, size = 0x4, scoped, tag = 'scoped memory for forward.1']
    %10 = vsyncpa [#allocation3], 0
    %11 = vsyncpa [#allocation5], 0
    // Predicated region
    $region2: #{forward.1} parent=1 // pred_check
      _
    $region3: #{forward.1} parent=1 // pred_check_branch
      %13 = sbr.rel (0) target = $region5
    $region4: #{forward.1} parent=1 // pred_region
      _
    $region5: #{forward.1} parent=1 // pred_fallthru
      _
    // Predicated region
    $region6: #{forward.1} parent=1 // pred_check
      _
    $region7: #{forward.1} parent=1 // pred_check_branch
      %15 = sbr.rel (0) target = $region9
    $region8: #{forward.1} parent=1 // pred_region
      %17 = vsyncadd [#allocation3], 0
      %s18 = sshll.u32 %s1, 4
      %s19 = int_to_ptr.hbm [resolvable:$true] %s18
      %s20 = sshll.u32 [#allocation2], 4
      %s21 = int_to_ptr.vmem [resolvable:$true] %s20
      %26 = dma.hbm_to_vmem [thread:$0]  %s19, 512, %s21, [#allocation3], 128, 128, 8
    $region9: #{forward.1} parent=1 // pred_fallthru
      _
    // Predicated region
    $region10: #{forward.1} parent=1 // pred_check
      _
    $region11: #{forward.1} parent=1 // pred_check_branch
      %28 = sbr.rel (0) target = $region13
    $region12: #{forward.1} parent=1 // pred_region
      _
    $region13: #{forward.1} parent=1 // pred_fallthru
      _
    // Predicated region
    $region14: #{forward.1} parent=1 // pred_check
      _
    $region15: #{forward.1} parent=1 // pred_check_branch
      %30 = sbr.rel (0) target = $region17
    $region16: #{forward.1} parent=1 // pred_region
      %32 = vsyncadd [#allocation5], 0
      %s33 = sshll.u32 %s3, 4
      %s34 = int_to_ptr.hbm [resolvable:$true] %s33
      %s35 = sshll.u32 [#allocation4], 4
      %s36 = int_to_ptr.vmem [resolvable:$true] %s35
      %41 = dma.hbm_to_vmem [thread:$0]  %s34, 2048, %s36, [#allocation5], 64, 64, 4
    $region17: #{forward.1} parent=1 // pred_fallthru
      _
    // Predicated region
    $region18: #{forward.1} parent=1 // pred_check
      _
    $region19: #{forward.1} parent=1 // pred_check_branch
      %43 = sbr.rel (0) target = $region21
    $region20: #{forward.1} parent=1 // pred_region
      _
    $region21: #{forward.1} parent=1 // pred_fallthru
      _
    // Predicated region
    $region22: #{forward.1} parent=1 // pred_check
      _
    $region23: #{forward.1} parent=1 // pred_check_branch
      %45 = sbr.rel (0) target = $region25
    $region24: #{forward.1} parent=1 // pred_region
      %47 = dma.done [#allocation3], 512
    $region25: #{forward.1} parent=1 // pred_fallthru
      _
    // Predicated region
    $region26: #{forward.1} parent=1 // pred_check
      _
    $region27: #{forward.1} parent=1 // pred_check_branch
      %49 = sbr.rel (0) target = $region29
    $region28: #{forward.1} parent=1 // pred_region
      %51 = dma.done [#allocation5], 2048
    $region29: #{forward.1} parent=1 // pred_fallthru
      _
    %v53 = vld [vmem:[%s0] sm:$0xf]
    %v54 = vld [vmem:[#allocation2] sm:$0xff]
    %v55 = vld [vmem:[#allocation2 + $0x8] sm:$0xff]
    %v56 = vld [vmem:[#allocation2 + $0x10] sm:$0xff]
    %v57 = vld [vmem:[#allocation2 + $0x18] sm:$0xff]
    %v58 = vld [vmem:[%s2] sm:$0x3]
    %v60 = vperm.slane %v58, 0
    %v61 = vperm.slane %v58, 1
    %v68 = vunpack.c.l.b16 %v54
    %v69 = vunpack.c.h.b16 %v54
    %v70 = vunpack.c.l.b16 %v55
    %v71 = vunpack.c.h.b16 %v55
    %v72 = vunpack.c.l.b16 %v56
    %v73 = vunpack.c.h.b16 %v56
    %v74 = vunpack.c.l.b16 %v57
    %v75 = vunpack.c.h.b16 %v57
    %v76 = vpack.c.b16 %v70, %v68
    %v77 = vpack.c.b16 %v71, %v69
    %v78 = vpack.c.b16 %v74, %v72
    %v79 = vpack.c.b16 %v75, %v73
    %vm84 = vcmask 261120
    %v86 = vsel %vm84, %v53, 0
    %88 = vmatpush.bf16.msra.mxu0 0
    %89 = vmatpush.bf16.msra.mxu0 0
    %90 = vmatpush.bf16.msra.mxu0 0
    %91 = vmatpush.bf16.msra.mxu0 0
    %92 = vmatpush.bf16.msra.mxu0 0
    %93 = vmatpush.bf16.msra.mxu0 0
    %94 = vmatpush.bf16.msra.mxu0 %v78
    %95 = vmatpush.bf16.msra.mxu0 %v76
    %96 = vmatmul.bf16.gmra.mxu0 %v86
    %v97 = vpop.f32.mrf.mxu0
    %v98 = vadd.f32 %v60, %v97
    %v99 = vpop.f32.mrf.mxu0
    %100 = vdwg.mxu0
    %101 = vmatpush.bf16.msra.mxu0 0
    %102 = vmatpush.bf16.msra.mxu0 0
    %103 = vmatpush.bf16.msra.mxu0 0
    %104 = vmatpush.bf16.msra.mxu0 0
    %105 = vmatpush.bf16.msra.mxu0 0
    %106 = vmatpush.bf16.msra.mxu0 0
    %107 = vmatpush.bf16.msra.mxu0 %v79
    %108 = vmatpush.bf16.msra.mxu0 %v77
    %109 = vmatmul.bf16.gmra.mxu0 %v86
    %v110 = vpop.f32.mrf.mxu0
    %v111 = vadd.f32 %v61, %v110
    %v112 = vpop.f32.mrf.mxu0
    %113 = vdwg.mxu0
    %v114 = vmax.f32 %v98, 0.0
    %v115 = vmax.f32 %v111, 0.0
    %v116 = vpack.c.bf16 %v114, %v114
    %v117 = vpack.c.bf16 %v115, %v115
    %v118 = vld [vmem:[#allocation4] sm:$0xf]
    %v119 = vld [vmem:[#allocation4 + $0x4] sm:$0xf]
    %v120 = vld [vmem:[#allocation4 + $0x8] sm:$0xf]
    %v121 = vld [vmem:[#allocation4 + $0xc] sm:$0xf]
    %v122 = vld [vmem:[#allocation4 + $0x10] sm:$0xf]
    %v123 = vld [vmem:[#allocation4 + $0x14] sm:$0xf]
    %v124 = vld [vmem:[#allocation4 + $0x18] sm:$0xf]
    %v125 = vld [vmem:[#allocation4 + $0x1c] sm:$0xf]
    %v126 = vld [vmem:[#allocation4 + $0x20] sm:$0xf]
    %v127 = vld [vmem:[#allocation4 + $0x24] sm:$0xf]
    %v128 = vld [vmem:[#allocation4 + $0x28] sm:$0xf]
    %v129 = vld [vmem:[#allocation4 + $0x2c] sm:$0xf]
    %v130 = vld [vmem:[#allocation4 + $0x30] sm:$0xf]
    %v131 = vld [vmem:[#allocation4 + $0x34] sm:$0xf]
    %v132 = vld [vmem:[#allocation4 + $0x38] sm:$0xf]
    %v133 = vld [vmem:[#allocation4 + $0x3c] sm:$0xf]
    %v134 = vld [vmem:[#allocation4 + $0x40] sm:$0xf]
    %v135 = vld [vmem:[#allocation4 + $0x44] sm:$0xf]
    %v136 = vld [vmem:[#allocation4 + $0x48] sm:$0xf]
    %v137 = vld [vmem:[#allocation4 + $0x4c] sm:$0xf]
    %v138 = vld [vmem:[#allocation4 + $0x50] sm:$0xf]
    %v139 = vld [vmem:[#allocation4 + $0x54] sm:$0xf]
    %v140 = vld [vmem:[#allocation4 + $0x58] sm:$0xf]
    %v141 = vld [vmem:[#allocation4 + $0x5c] sm:$0xf]
    %v142 = vld [vmem:[#allocation4 + $0x60] sm:$0xf]
    %v143 = vld [vmem:[#allocation4 + $0x64] sm:$0xf]
    %v144 = vld [vmem:[#allocation4 + $0x68] sm:$0xf]
    %v145 = vld [vmem:[#allocation4 + $0x6c] sm:$0xf]
    %v146 = vld [vmem:[#allocation4 + $0x70] sm:$0xf]
    %v147 = vld [vmem:[#allocation4 + $0x74] sm:$0xf]
    %v148 = vld [vmem:[#allocation4 + $0x78] sm:$0xf]
    %v149 = vld [vmem:[#allocation4 + $0x7c] sm:$0xf]
    %v150 = vld [vmem:[%s4] sm:$0x1]
    %v152 = vperm.slane %v150, 0
    %v186 = vunpack.c.l.b16 %v118
    %v187 = vunpack.c.l.b16 %v119
    %v188 = vunpack.c.l.b16 %v120
    %v189 = vunpack.c.l.b16 %v121
    %v190 = vunpack.c.l.b16 %v122
    %v191 = vunpack.c.l.b16 %v123
    %v192 = vunpack.c.l.b16 %v124
    %v193 = vunpack.c.l.b16 %v125
    %v194 = vunpack.c.l.b16 %v126
    %v195 = vunpack.c.l.b16 %v127
    %v196 = vunpack.c.l.b16 %v128
    %v197 = vunpack.c.l.b16 %v129
    %v198 = vunpack.c.l.b16 %v130
    %v199 = vunpack.c.l.b16 %v131
    %v200 = vunpack.c.l.b16 %v132
    %v201 = vunpack.c.l.b16 %v133
    %v202 = vunpack.c.l.b16 %v134
    %v203 = vunpack.c.l.b16 %v135
    %v204 = vunpack.c.l.b16 %v136
    %v205 = vunpack.c.l.b16 %v137
    %v206 = vunpack.c.l.b16 %v138
    %v207 = vunpack.c.l.b16 %v139
    %v208 = vunpack.c.l.b16 %v140
    %v209 = vunpack.c.l.b16 %v141
    %v210 = vunpack.c.l.b16 %v142
    %v211 = vunpack.c.l.b16 %v143
    %v212 = vunpack.c.l.b16 %v144
    %v213 = vunpack.c.l.b16 %v145
    %v214 = vunpack.c.l.b16 %v146
    %v215 = vunpack.c.l.b16 %v147
    %v216 = vunpack.c.l.b16 %v148
    %v217 = vunpack.c.l.b16 %v149
    %v218 = vpack.c.b16 %v187, %v186
    %v219 = vpack.c.b16 %v189, %v188
    %v220 = vpack.c.b16 %v191, %v190
    %v221 = vpack.c.b16 %v193, %v192
    %v222 = vpack.c.b16 %v195, %v194
    %v223 = vpack.c.b16 %v197, %v196
    %v224 = vpack.c.b16 %v199, %v198
    %v225 = vpack.c.b16 %v201, %v200
    %v226 = vpack.c.b16 %v203, %v202
    %v227 = vpack.c.b16 %v205, %v204
    %v228 = vpack.c.b16 %v207, %v206
    %v229 = vpack.c.b16 %v209, %v208
    %v230 = vpack.c.b16 %v211, %v210
    %v231 = vpack.c.b16 %v213, %v212
    %v232 = vpack.c.b16 %v215, %v214
    %v233 = vpack.c.b16 %v217, %v216
    %250 = vmatpush.bf16.msra.mxu0 %v225
    %251 = vmatpush.bf16.msra.mxu0 %v224
    %252 = vmatpush.bf16.msra.mxu0 %v223
    %253 = vmatpush.bf16.msra.mxu0 %v222
    %254 = vmatpush.bf16.msra.mxu0 %v221
    %255 = vmatpush.bf16.msra.mxu0 %v220
    %256 = vmatpush.bf16.msra.mxu0 %v219
    %257 = vmatpush.bf16.msra.mxu0 %v218
    %258 = vmatmul.bf16.gmra.mxu0 %v116
    %v259 = vpop.f32.mrf.mxu0
    %v260 = vadd.f32 %v152, %v259
    %v261 = vpop.f32.mrf.mxu0
    %262 = vdwg.mxu0
    %263 = vmatpush.bf16.msra.mxu0 %v233
    %264 = vmatpush.bf16.msra.mxu0 %v232
    %265 = vmatpush.bf16.msra.mxu0 %v231
    %266 = vmatpush.bf16.msra.mxu0 %v230
    %267 = vmatpush.bf16.msra.mxu0 %v229
    %268 = vmatpush.bf16.msra.mxu0 %v228
    %269 = vmatpush.bf16.msra.mxu0 %v227
    %270 = vmatpush.bf16.msra.mxu0 %v226
    %271 = vmatmul.bf16.gmra.mxu0 %v117
    %v272 = vpop.f32.mrf.mxu0
    %v273 = vadd.f32 %v260, %v272
    %v274 = vpop.f32.mrf.mxu0
    %275 = vdwg.mxu0
    %276 = vst [vmem:[%s5] sm:$0xff] %v273
    // Predicated region
    $region30: #{forward.1} parent=1 // pred_check
      _
    $region31: #{forward.1} parent=1 // pred_check_branch
      %278 = sbr.rel (0) target = $region33
    $region32: #{forward.1} parent=1 // pred_region
      _
    $region33: #{forward.1} parent=1 // pred_fallthru
      _
    // Predicated region
    $region34: #{forward.1} parent=1 // pred_check
      _
    $region35: #{forward.1} parent=1 // pred_check_branch
      %280 = sbr.rel (0) target = $region37
    $region36: #{forward.1} parent=1 // pred_region
      _
    $region37: #{forward.1} parent=1 // pred_fallthru
      _
    %281 = vsyncpa [#allocation3], 1
    %282 = vsyncpa [#allocation5], 1

</llo_original>
